<compile_context>
chip_gen: v6e
topology: v6e:2x2x1
jax: 0.10.0
libtpu: 0.0.40
codegen_flags: <defaults>
</compile_context>

<pallas_src>
import functools
import math

import jax
import jax.numpy as jnp
from jax import lax
from jax.experimental import pallas as pl
from jax.experimental.pallas import tpu as pltpu


def _round_up(n, k):
    return ((n + k - 1) // k) * k


def _arcface_kernel(x_ref, w_ref, lab_ref, loss_ref,
                    xn_scr, m_scr, l_scr, t_scr,
                    *, cos_m, sin_m, th, mm, s, inv_s,
                    num_classes, block_c, has_class_pad):
    ci = pl.program_id(1)

    # Per-B-tile prologue: normalize x once, reset the online-softmax state.
    @pl.when(ci == 0)
    def _init():
        x = x_ref[...].astype(jnp.float32)                       # (TB, E)
        inv_n = lax.rsqrt(jnp.maximum(
            jnp.sum(x * x, axis=-1, keepdims=True), 1e-24))      # EUP rsqrt
        xn_scr[...] = (x * inv_n).astype(xn_scr.dtype)
        m_scr[...] = jnp.full_like(m_scr, -jnp.inf)
        l_scr[...] = jnp.zeros_like(l_scr)
        t_scr[...] = jnp.zeros_like(t_scr)

    # MXU: (TB, E) @ (E, TC) with bf16 inputs / f32 accumulation.  The weight
    # tile is already unit-normalized and pre-scaled by s, so this is s*cosine.
    logit = jnp.dot(xn_scr[...], w_ref[...],
                    preferred_element_type=jnp.float32)          # (TB, TC)

    # Target mask: loop-invariant local iota vs. label shifted by the tile
    # offset (scalar work), instead of rebuilding a global column index.
    lab_local = lab_ref[...] - ci * block_c                      # (TB, 1)
    local_col = lax.broadcasted_iota(jnp.int32, logit.shape, 1)  # (TB, TC)
    tgt_mask = local_col == lab_local                            # (TB, TC)

    # Target cosine for this tile (exactly 0 when the target is elsewhere);
    # single masked row-reduction, accumulated raw (margin applied later).
    s_cos_t = jnp.sum(jnp.where(tgt_mask, logit, 0.0),
                      axis=-1, keepdims=True)                    # (TB, 1)
    cos_t = s_cos_t * inv_s
    t_scr[...] = t_scr[...] + cos_t

    # ArcFace margin on (TB,1) only, to substitute the target logit in the
    # streaming logsumexp (value unused when the target is not in this tile).
    sine = jnp.sqrt(jnp.clip(1.0 - cos_t * cos_t, 0.0, 1.0))
    phi = cos_t * cos_m - sine * sin_m
    phi = jnp.where(cos_t > th, phi, cos_t - mm)

    logits = jnp.where(tgt_mask, phi * s, logit)
    if has_class_pad:
        # Padded class columns (zero weight rows) give logit 0; exclude them.
        # Only the last C tile actually has any, and it still has >= 1 real
        # column (c_pad - C < tc), so the row max below stays finite.
        limit = num_classes - ci * block_c
        logits = jnp.where(local_col < limit, logits, -jnp.inf)

    # Online logsumexp across C tiles.
    m_prev = m_scr[...]
    m_new = jnp.maximum(m_prev, jnp.max(logits, axis=-1, keepdims=True))
    alpha = jnp.exp(m_prev - m_new)
    l_scr[...] = l_scr[...] * alpha + jnp.sum(jnp.exp(logits - m_new),
                                              axis=-1, keepdims=True)
    m_scr[...] = m_new

    @pl.when(ci == pl.num_programs(1) - 1)
    def _finalize():
        # Re-derive phi from the accumulated target cosine (bit-identical to
        # the per-step value: other tiles contributed exactly 0).
        ct = t_scr[...]
        sn = jnp.sqrt(jnp.clip(1.0 - ct * ct, 0.0, 1.0))
        ph = ct * cos_m - sn * sin_m
        ph = jnp.where(ct > th, ph, ct - mm)
        # per-row loss = logsumexp - target_logit
        loss_ref[...] = (m_scr[...] + jnp.log(l_scr[...])) - ph * s


def arcface_loss(x, label, weight, *, s=30.0, m=0.5,
                 block_b=256, block_c=512, min_b_tiles=1):
    """x: (B,E) f32, label: (B,) int, weight: (C,E) f32 -> scalar mean loss.

    min_b_tiles: set to 2 on v7x (2 TensorCores/chip) so the "parallel" B axis
    can shard across both cores; leave at 1 on v5e/v6e to minimize weight
    re-streaming.
    """
    B, E = x.shape
    C = weight.shape[0]

    tb = min(block_b, _round_up(B, 8))            # sublane-aligned batch tile
    if min_b_tiles > 1:
        tb = min(tb, _round_up(-(-B // min_b_tiles), 8))
    tc = min(block_c, _round_up(C, 128))          # lane-aligned class tile
    b_pad = _round_up(B, tb)
    c_pad = _round_up(C, tc)
    has_class_pad = c_pad != C

    # Pre-normalize the class weights once (f32), fold the logit scale s into
    # them, transpose to (E, C) so the in-kernel matmul needs no transpose,
    # and cast to bf16 to halve the dominant weight HBM stream.
    wn = weight / jnp.maximum(
        jnp.sqrt(jnp.sum(weight * weight, axis=1, keepdims=True)), 1e-12)
    w_t = (wn * s).T.astype(jnp.bfloat16)                          # (E, C)
    if has_class_pad:
        w_t = jnp.pad(w_t, ((0, 0), (0, c_pad - C)))               # zero cols

    if b_pad != B:
        x = jnp.pad(x, ((0, b_pad - B), (0, 0)))
        label = jnp.pad(label, (0, b_pad - B), constant_values=-1)
    lab2d = label.astype(jnp.int32).reshape(b_pad, 1)

    kernel = functools.partial(
        _arcface_kernel,
        cos_m=math.cos(m), sin_m=math.sin(m),
        th=math.cos(math.pi - m), mm=math.sin(math.pi - m) * m,
        s=s, inv_s=1.0 / s, num_classes=C, block_c=tc,
        has_class_pad=has_class_pad)

    # VMEM budget derived from the actual tile footprint (double-buffered
    # blocks + scratch + live (tb,tc) temporaries), capped under v7x's 64 MiB.
    vmem_bytes = (2 * (tb * E * 4)            # x blocks (f32, double-buffered)
                  + 2 * (E * tc * 2)          # weight blocks (bf16)
                  + 4 * (tb * 4)              # label + loss blocks
                  + tb * E * 2 + 3 * tb * 4   # xn + m/l/t scratch
                  + 8 * tb * tc * 4)          # live f32 temporaries
    vmem_limit = int(min(max(2 * vmem_bytes, 16 << 20), 56 << 20))

    grid = (b_pad // tb, c_pad // tc)
    row_losses = pl.pallas_call(
        kernel,
        out_shape=jax.ShapeDtypeStruct((b_pad, 1), jnp.float32),
        grid_spec=pltpu.PrefetchScalarGridSpec(
            num_scalar_prefetch=0,
            grid=grid,
            in_specs=[
                pl.BlockSpec((tb, E), lambda bi, ci: (bi, 0)),   # x
                pl.BlockSpec((E, tc), lambda bi, ci: (0, ci)),   # s*normalized W^T
                pl.BlockSpec((tb, 1), lambda bi, ci: (bi, 0)),   # labels
            ],
            out_specs=pl.BlockSpec((tb, 1), lambda bi, ci: (bi, 0)),
            scratch_shapes=[
                pltpu.VMEM((tb, E), jnp.bfloat16),   # cached normalized x
                pltpu.VMEM((tb, 1), jnp.float32),    # running max
                pltpu.VMEM((tb, 1), jnp.float32),    # running sum
                pltpu.VMEM((tb, 1), jnp.float32),    # target cosine
            ]),
        compiler_params=pltpu.CompilerParams(
            dimension_semantics=("parallel", "arbitrary"),
            vmem_limit_bytes=vmem_limit),
    )(x, w_t, lab2d)

    # Mean over the real (un-padded) rows; padded rows are finite garbage.
    return jnp.sum(row_losses[:B, 0]) / B


def _arcface_ref(x, label, weight, *, s=30.0, m=0.5):
    """Pure-JAX f32 reference mirroring the PyTorch module."""
    xn = x / jnp.maximum(jnp.sqrt(jnp.sum(x * x, axis=1, keepdims=True)), 1e-12)
    wn = weight / jnp.maximum(
        jnp.sqrt(jnp.sum(weight * weight, axis=1, keepdims=True)), 1e-12)
    cosine = xn @ wn.T
    sine = jnp.sqrt(jnp.clip(1.0 - cosine * cosine, 0.0, 1.0))
    phi = cosine * math.cos(m) - sine * math.sin(m)
    phi = jnp.where(cosine > math.cos(math.pi - m), phi,
                    cosine - math.sin(math.pi - m) * m)
    onehot = jax.nn.one_hot(label, weight.shape[0], dtype=cosine.dtype)
    logits = jnp.where(onehot > 0.5, phi, cosine) * s
    lse = jax.scipy.special.logsumexp(logits, axis=1)
    tgt = jnp.sum(logits * onehot, axis=1)
    return jnp.mean(lse - tgt)


if __name__ == "__main__":
    # Small shapes that still exercise the tiled path: 2 B tiles x 4 C tiles,
    # with both batch-row padding (12 -> 16) and class padding (500 -> 512).
    B, E, C = 12, 128, 500
    key = jax.random.PRNGKey(0)
    kx, kw, kl = jax.random.split(key, 3)

    x = jax.random.normal(kx, (B, E), dtype=jnp.float32)
    label = jax.random.randint(kl, (B,), 0, C, dtype=jnp.int32)

    # Xavier-uniform init for weight (class_num, embedding_size), as in __init__.
    bound = math.sqrt(6.0 / (C + E))
    weight = jax.random.uniform(kw, (C, E), dtype=jnp.float32,
                                minval=-bound, maxval=bound)

    loss = arcface_loss(x, label, weight, s=30.0, m=0.5,
                        block_b=8, block_c=128)
    loss = jax.block_until_ready(loss)

    ref = jax.block_until_ready(_arcface_ref(x, label, weight, s=30.0, m=0.5))
    err = abs(float(loss) - float(ref))
    tol = 0.05 * abs(float(ref)) + 0.05   # loose: bf16 MXU inputs vs f32 ref
    if bool(jnp.isfinite(loss)) and err <= tol:
        print("KERNEL_OK")
    else:
        print(f"MISMATCH kernel={float(loss):.6f} ref={float(ref):.6f}")
</pallas_src>

<mosaic_0001>
module attributes {stable_mosaic.version = 11 : i64} {
  func.func @_arcface_kernel(%arg0: i32, %arg1: i32, %arg2: memref<8x128xf32, #tpu.memory_space<vmem>>, %arg3: memref<128x128xbf16, #tpu.memory_space<vmem>>, %arg4: memref<8x1xi32, #tpu.memory_space<vmem>>, %arg5: memref<8x1xf32, #tpu.memory_space<vmem>>, %arg6: memref<8x128xbf16, #tpu.memory_space<vmem>>, %arg7: memref<8x1xf32, #tpu.memory_space<vmem>>, %arg8: memref<8x1xf32, #tpu.memory_space<vmem>>, %arg9: memref<8x1xf32, #tpu.memory_space<vmem>>) attributes {dimension_semantics = [#tpu.dimension_semantics<parallel>, #tpu.dimension_semantics<arbitrary>], iteration_bounds = array<i64: 2, 4>, scalar_prefetch = 0 : i64, scratch_operands = 4 : i64, tpu.core_type = #tpu.core_type<tc>, window_params = [{transform_indices = @transform_0, window_bounds = array<i64: 8, 128>}, {transform_indices = @transform_1, window_bounds = array<i64: 128, 128>}, {transform_indices = @transform_2, window_bounds = array<i64: 8, 1>}, {transform_indices = @transform_3, window_bounds = array<i64: 8, 1>}]} {
    %c0_i32 = arith.constant 0 : i32
    %0 = arith.cmpi eq, %arg1, %c0_i32 : i32
    %1 = arith.extui %0 : i1 to i32
    %c0_i32_0 = arith.constant 0 : i32
    %2 = arith.cmpi ne, %1, %c0_i32_0 : i32
    scf.if %2 {
      %c0_34 = arith.constant 0 : index
      %c0_35 = arith.constant 0 : index
      %70 = vector.load %arg2[%c0_34, %c0_35] : memref<8x128xf32, #tpu.memory_space<vmem>>, vector<8x128xf32>
      %71 = arith.mulf %70, %70 : vector<8x128xf32>
      %cst_36 = arith.constant dense<0.000000e+00> : vector<8xf32>
      %72 = vector.multi_reduction <add>, %71, %cst_36 [1] : vector<8x128xf32> to vector<8xf32>
      %73 = vector.shape_cast %72 : vector<8xf32> to vector<8x1xf32>
      %cst_37 = arith.constant 1.000000e-24 : f32
      %74 = vector.broadcast %cst_37 : f32 to vector<8x1xf32>
      %75 = arith.maximumf %73, %74 : vector<8x1xf32>
      %76 = math.rsqrt %75 : vector<8x1xf32>
      %77 = vector.broadcast %76 : vector<8x1xf32> to vector<8x128xf32>
      %78 = arith.mulf %70, %77 : vector<8x128xf32>
      %79 = arith.truncf %78 : vector<8x128xf32> to vector<8x128xbf16>
      %c0_38 = arith.constant 0 : index
      %c0_39 = arith.constant 0 : index
      %80 = vector.load %arg6[%c0_38, %c0_39] : memref<8x128xbf16, #tpu.memory_space<vmem>>, vector<8x128xbf16>
      tpu.vector_store %arg6[%c0_38, %c0_39], %79 {strides = array<i32>} : memref<8x128xbf16, #tpu.memory_space<vmem>>, vector<8x128xbf16>,
      %cst_40 = arith.constant 0xFF800000 : f32
      %81 = vector.broadcast %cst_40 : f32 to vector<8x1xf32>
      %c0_41 = arith.constant 0 : index
      %c0_42 = arith.constant 0 : index
      %82 = vector.load %arg7[%c0_41, %c0_42] : memref<8x1xf32, #tpu.memory_space<vmem>>, vector<8x1xf32>
      tpu.vector_store %arg7[%c0_41, %c0_42], %81 {strides = array<i32>} : memref<8x1xf32, #tpu.memory_space<vmem>>, vector<8x1xf32>,
      %cst_43 = arith.constant 0.000000e+00 : f32
      %83 = vector.broadcast %cst_43 : f32 to vector<8x1xf32>
      %c0_44 = arith.constant 0 : index
      %c0_45 = arith.constant 0 : index
      %84 = vector.load %arg8[%c0_44, %c0_45] : memref<8x1xf32, #tpu.memory_space<vmem>>, vector<8x1xf32>
      tpu.vector_store %arg8[%c0_44, %c0_45], %83 {strides = array<i32>} : memref<8x1xf32, #tpu.memory_space<vmem>>, vector<8x1xf32>,
      %cst_46 = arith.constant 0.000000e+00 : f32
      %85 = vector.broadcast %cst_46 : f32 to vector<8x1xf32>
      %c0_47 = arith.constant 0 : index
      %c0_48 = arith.constant 0 : index
      %86 = vector.load %arg9[%c0_47, %c0_48] : memref<8x1xf32, #tpu.memory_space<vmem>>, vector<8x1xf32>
      tpu.vector_store %arg9[%c0_47, %c0_48], %85 {strides = array<i32>} : memref<8x1xf32, #tpu.memory_space<vmem>>, vector<8x1xf32>,
    } else {
    }
    %c0 = arith.constant 0 : index
    %c0_1 = arith.constant 0 : index
    %3 = vector.load %arg6[%c0, %c0_1] : memref<8x128xbf16, #tpu.memory_space<vmem>>, vector<8x128xbf16>
    %c0_2 = arith.constant 0 : index
    %c0_3 = arith.constant 0 : index
    %4 = vector.load %arg3[%c0_2, %c0_3] : memref<128x128xbf16, #tpu.memory_space<vmem>>, vector<128x128xbf16>
    %cst = arith.constant dense<0.000000e+00> : vector<8x128xf32>
    %5 = tpu.matmul %3, %4, %cst {dimension_numbers = #tpu.dot_dimension_numbers<[1], [0], [0], [1], [0, 0, 1, 1], [], []>} : vector<8x128xbf16>, vector<128x128xbf16>, vector<8x128xf32> -> vector<8x128xf32>
    %c0_4 = arith.constant 0 : index
    %c0_5 = arith.constant 0 : index
    %6 = vector.load %arg4[%c0_4, %c0_5] : memref<8x1xi32, #tpu.memory_space<vmem>>, vector<8x1xi32>
    %c128_i32 = arith.constant 128 : i32
    %7 = arith.muli %arg1, %c128_i32 : i32
    %8 = vector.broadcast %7 : i32 to vector<8x1xi32>
    %9 = arith.subi %6, %8 : vector<8x1xi32>
    %10 = tpu.iota {dimensions = array<i32: 1>} : vector<8x128xi32>
    %11 = vector.broadcast %9 : vector<8x1xi32> to vector<8x128xi32>
    %12 = arith.cmpi eq, %10, %11 : vector<8x128xi32>
    %cst_6 = arith.constant 0.000000e+00 : f32
    %13 = vector.broadcast %cst_6 : f32 to vector<8x128xf32>
    %14 = arith.select %12, %5, %13 : vector<8x128xi1>, vector<8x128xf32>
    %cst_7 = arith.constant dense<0.000000e+00> : vector<8xf32>
    %15 = vector.multi_reduction <add>, %14, %cst_7 [1] : vector<8x128xf32> to vector<8xf32>
    %16 = vector.shape_cast %15 : vector<8xf32> to vector<8x1xf32>
    %cst_8 = arith.constant 0.0333333351 : f32
    %17 = vector.broadcast %cst_8 : f32 to vector<8x1xf32>
    %18 = arith.mulf %16, %17 : vector<8x1xf32>
    %c0_9 = arith.constant 0 : index
    %c0_10 = arith.constant 0 : index
    %19 = vector.load %arg9[%c0_9, %c0_10] : memref<8x1xf32, #tpu.memory_space<vmem>>, vector<8x1xf32>
    %20 = arith.addf %19, %18 : vector<8x1xf32>
    %c0_11 = arith.constant 0 : index
    %c0_12 = arith.constant 0 : index
    %21 = vector.load %arg9[%c0_11, %c0_12] : memref<8x1xf32, #tpu.memory_space<vmem>>, vector<8x1xf32>
    tpu.vector_store %arg9[%c0_11, %c0_12], %20 {strides = array<i32>} : memref<8x1xf32, #tpu.memory_space<vmem>>, vector<8x1xf32>,
    %22 = arith.mulf %18, %18 : vector<8x1xf32>
    %cst_13 = arith.constant 1.000000e+00 : f32
    %23 = vector.broadcast %cst_13 : f32 to vector<8x1xf32>
    %24 = arith.subf %23, %22 : vector<8x1xf32>
    %cst_14 = arith.constant 0.000000e+00 : f32
    %cst_15 = arith.constant 1.000000e+00 : f32
    %25 = vector.broadcast %cst_14 : f32 to vector<8x1xf32>
    %26 = arith.maximumf %25, %24 : vector<8x1xf32>
    %27 = vector.broadcast %cst_15 : f32 to vector<8x1xf32>
    %28 = arith.minimumf %27, %26 : vector<8x1xf32>
    %29 = math.sqrt %28 : vector<8x1xf32>
    %cst_16 = arith.constant 0.87758255 : f32
    %30 = vector.broadcast %cst_16 : f32 to vector<8x1xf32>
    %31 = arith.mulf %18, %30 : vector<8x1xf32>
    %cst_17 = arith.constant 0.47942555 : f32
    %32 = vector.broadcast %cst_17 : f32 to vector<8x1xf32>
    %33 = arith.mulf %29, %32 : vector<8x1xf32>
    %34 = arith.subf %31, %33 : vector<8x1xf32>
    %cst_18 = arith.constant -0.87758255 : f32
    %35 = vector.broadcast %cst_18 : f32 to vector<8x1xf32>
    %36 = arith.cmpf ogt, %18, %35 : vector<8x1xf32>
    %cst_19 = arith.constant 0.239712775 : f32
    %37 = vector.broadcast %cst_19 : f32 to vector<8x1xf32>
    %38 = arith.subf %18, %37 : vector<8x1xf32>
    %39 = arith.select %36, %34, %38 : vector<8x1xi1>, vector<8x1xf32>
    %cst_20 = arith.constant 3.000000e+01 : f32
    %40 = vector.broadcast %cst_20 : f32 to vector<8x1xf32>
    %41 = arith.mulf %39, %40 : vector<8x1xf32>
    %42 = vector.shape_cast %41 : vector<8x1xf32> to vector<8x1xf32>
    %43 = vector.broadcast %42 : vector<8x1xf32> to vector<8x128xf32>
    %44 = arith.select %12, %43, %5 : vector<8x128xi1>, vector<8x128xf32>
    %c128_i32_21 = arith.constant 128 : i32
    %45 = arith.muli %arg1, %c128_i32_21 : i32
    %c500_i32 = arith.constant 500 : i32
    %46 = arith.subi %c500_i32, %45 : i32
    %47 = vector.broadcast %46 : i32 to vector<8x128xi32>
    %48 = arith.cmpi slt, %10, %47 : vector<8x128xi32>
    %cst_22 = arith.constant 0xFF800000 : f32
    %49 = vector.broadcast %cst_22 : f32 to vector<8x128xf32>
    %50 = arith.select %48, %44, %49 : vector<8x128xi1>, vector<8x128xf32>
    %c0_23 = arith.constant 0 : index
    %c0_24 = arith.constant 0 : index
    %51 = vector.load %arg7[%c0_23, %c0_24] : memref<8x1xf32, #tpu.memory_space<vmem>>, vector<8x1xf32>
    %cst_25 = arith.constant dense<0xFF800000> : vector<8xf32>
    %52 = vector.multi_reduction <maximumf>, %50, %cst_25 [1] : vector<8x128xf32> to vector<8xf32>
    %53 = vector.shape_cast %52 : vector<8xf32> to vector<8x1xf32>
    %54 = arith.maximumf %51, %53 : vector<8x1xf32>
    %55 = arith.subf %51, %54 : vector<8x1xf32>
    %56 = math.exp %55 : vector<8x1xf32>
    %c0_26 = arith.constant 0 : index
    %c0_27 = arith.constant 0 : index
    %57 = vector.load %arg8[%c0_26, %c0_27] : memref<8x1xf32, #tpu.memory_space<vmem>>, vector<8x1xf32>
    %58 = arith.mulf %57, %56 : vector<8x1xf32>
    %59 = vector.broadcast %54 : vector<8x1xf32> to vector<8x128xf32>
    %60 = arith.subf %50, %59 : vector<8x128xf32>
    %61 = math.exp %60 : vector<8x128xf32>
    %cst_28 = arith.constant dense<0.000000e+00> : vector<8xf32>
    %62 = vector.multi_reduction <add>, %61, %cst_28 [1] : vector<8x128xf32> to vector<8xf32>
    %63 = vector.shape_cast %62 : vector<8xf32> to vector<8x1xf32>
    %64 = arith.addf %58, %63 : vector<8x1xf32>
    %c0_29 = arith.constant 0 : index
    %c0_30 = arith.constant 0 : index
    %65 = vector.load %arg8[%c0_29, %c0_30] : memref<8x1xf32, #tpu.memory_space<vmem>>, vector<8x1xf32>
    tpu.vector_store %arg8[%c0_29, %c0_30], %64 {strides = array<i32>} : memref<8x1xf32, #tpu.memory_space<vmem>>, vector<8x1xf32>,
    %c0_31 = arith.constant 0 : index
    %c0_32 = arith.constant 0 : index
    %66 = vector.load %arg7[%c0_31, %c0_32] : memref<8x1xf32, #tpu.memory_space<vmem>>, vector<8x1xf32>
    tpu.vector_store %arg7[%c0_31, %c0_32], %54 {strides = array<i32>} : memref<8x1xf32, #tpu.memory_space<vmem>>, vector<8x1xf32>,
    %c3_i32 = arith.constant 3 : i32
    %67 = arith.cmpi eq, %arg1, %c3_i32 : i32
    %68 = arith.extui %67 : i1 to i32
    %c0_i32_33 = arith.constant 0 : i32
    %69 = arith.cmpi ne, %68, %c0_i32_33 : i32
    scf.if %69 {
      %c0_34 = arith.constant 0 : index
      %c0_35 = arith.constant 0 : index
      %70 = vector.load %arg9[%c0_34, %c0_35] : memref<8x1xf32, #tpu.memory_space<vmem>>, vector<8x1xf32>
      %71 = arith.mulf %70, %70 : vector<8x1xf32>
      %cst_36 = arith.constant 1.000000e+00 : f32
      %72 = vector.broadcast %cst_36 : f32 to vector<8x1xf32>
      %73 = arith.subf %72, %71 : vector<8x1xf32>
      %cst_37 = arith.constant 0.000000e+00 : f32
      %cst_38 = arith.constant 1.000000e+00 : f32
      %74 = vector.broadcast %cst_37 : f32 to vector<8x1xf32>
      %75 = arith.maximumf %74, %73 : vector<8x1xf32>
      %76 = vector.broadcast %cst_38 : f32 to vector<8x1xf32>
      %77 = arith.minimumf %76, %75 : vector<8x1xf32>
      %78 = math.sqrt %77 : vector<8x1xf32>
      %cst_39 = arith.constant 0.87758255 : f32
      %79 = vector.broadcast %cst_39 : f32 to vector<8x1xf32>
      %80 = arith.mulf %70, %79 : vector<8x1xf32>
      %cst_40 = arith.constant 0.47942555 : f32
      %81 = vector.broadcast %cst_40 : f32 to vector<8x1xf32>
      %82 = arith.mulf %78, %81 : vector<8x1xf32>
      %83 = arith.subf %80, %82 : vector<8x1xf32>
      %cst_41 = arith.constant -0.87758255 : f32
      %84 = vector.broadcast %cst_41 : f32 to vector<8x1xf32>
      %85 = arith.cmpf ogt, %70, %84 : vector<8x1xf32>
      %cst_42 = arith.constant 0.239712775 : f32
      %86 = vector.broadcast %cst_42 : f32 to vector<8x1xf32>
      %87 = arith.subf %70, %86 : vector<8x1xf32>
      %88 = arith.select %85, %83, %87 : vector<8x1xi1>, vector<8x1xf32>
      %c0_43 = arith.constant 0 : index
      %c0_44 = arith.constant 0 : index
      %89 = vector.load %arg7[%c0_43, %c0_44] : memref<8x1xf32, #tpu.memory_space<vmem>>, vector<8x1xf32>
      %c0_45 = arith.constant 0 : index
      %c0_46 = arith.constant 0 : index
      %90 = vector.load %arg8[%c0_45, %c0_46] : memref<8x1xf32, #tpu.memory_space<vmem>>, vector<8x1xf32>
      %91 = math.log %90 : vector<8x1xf32>
      %92 = arith.addf %89, %91 : vector<8x1xf32>
      %cst_47 = arith.constant 3.000000e+01 : f32
      %93 = vector.broadcast %cst_47 : f32 to vector<8x1xf32>
      %94 = arith.mulf %88, %93 : vector<8x1xf32>
      %95 = arith.subf %92, %94 : vector<8x1xf32>
      %c0_48 = arith.constant 0 : index
      %c0_49 = arith.constant 0 : index
      %96 = vector.load %arg5[%c0_48, %c0_49] : memref<8x1xf32, #tpu.memory_space<vmem>>, vector<8x1xf32>
      tpu.vector_store %arg5[%c0_48, %c0_49], %95 {strides = array<i32>} : memref<8x1xf32, #tpu.memory_space<vmem>>, vector<8x1xf32>,
    } else {
    }
    return
  }
  func.func @transform_0(%arg0: i32, %arg1: i32) -> (i32, i32) {
    %c0_i32 = arith.constant 0 : i32
    %c0_i32_0 = arith.constant 0 : i32
    return %arg0, %c0_i32 : i32, i32
  }
  func.func @transform_1(%arg0: i32, %arg1: i32) -> (i32, i32) {
    %c0_i32 = arith.constant 0 : i32
    %c0_i32_0 = arith.constant 0 : i32
    return %c0_i32, %arg1 : i32, i32
  }
  func.func @transform_2(%arg0: i32, %arg1: i32) -> (i32, i32) {
    %c0_i32 = arith.constant 0 : i32
    %c0_i32_0 = arith.constant 0 : i32
    return %arg0, %c0_i32 : i32, i32
  }
  func.func @transform_3(%arg0: i32, %arg1: i32) -> (i32, i32) {
    %c0_i32 = arith.constant 0 : i32
    %c0_i32_0 = arith.constant 0 : i32
    return %arg0, %c0_i32 : i32, i32
  }
}

</mosaic_0001>

<llo_original>
// kernel: tpu_custom_call.1
$region0: #{tpu_custom_call.1}
  #allocation0 [shape = 'u32[]', space=smem, size = 0x4, offset = 0x4, fixed_abs, tag = 'smem constant byte address 0x4 - core index']
  #allocation1 [shape = 'u32[144,128]{1,0:T(1,128)}', space=vmem, size = 0x12000, scoped, tag = 'internal scratch']
  #allocation2 [shape = 'bf16[8,128]{1,0:T(8,128)(2,1)}', space=vmem, size = 0x800, scoped, tag = 'scratch operand']
  #allocation3 [shape = 'f32[8,1]{1,0:T(8,128)}', space=vmem, size = 0x1000, scoped, tag = 'scratch operand']
  #allocation4 [shape = 'f32[8,1]{1,0:T(8,128)}', space=vmem, size = 0x1000, scoped, tag = 'scratch operand']
  #allocation5 [shape = 'f32[8,1]{1,0:T(8,128)}', space=vmem, size = 0x1000, scoped, tag = 'scratch operand']
  %s0 = inlined_call_operand.vmem [shape: f32[16,128], index: 0, kind: input, shape index: {}]
  %s1 = inlined_call_operand.hbm [shape: bf16[128,512], index: 1, kind: input, shape index: {}]
  %s2 = inlined_call_operand.vmem [shape: s32[16,1], index: 2, kind: input, shape index: {}]
  %s3 = inlined_call_operand.vmem [shape: f32[16,1], index: 3, kind: output, shape index: {}]
  %s4 = sld [smem:[#allocation0]]
  $region57: #{tpu_custom_call.1} parent=0
    _
  %s6 = ssub.s32 1, %s4
  %s7 = scalar_select 0, %s6, %s4
  $region1: #{tpu_custom_call.1} parent=0
    #allocation6 [shape = 'u8[65536]{0}', space=vmem, size = 0x10000, scoped, tag = 'input window, operand 1']
    #allocation7 [shape = 's32[2]{0}', space=sflag, size = 0x8, scoped, tag = 'scoped memory for tpu_custom_call.1']
    %8 = vsyncpa [#allocation7], 0
    %s9 = scalar_lea.sflag [#allocation7], 1
    %10 = vsyncpa %s9, 0
    loop: start=0, step=1, limit=10
    $region2: #{tpu_custom_call.1} parent=1 // loop_pre_header
      _
    $region3: #{tpu_custom_call.1} parent=1 // loop_header
      %s12 = sphi 0, %s16
      %p13 = scmp.ge.s32.totalorder %s12, 10
      %s19 = sphi 0, %s31
      %s20 = sphi 0, %s27
      %s21 = sphi 0, %s19
      %s22 = sphi 0, %s20
      %s23 = sphi 0, %s21
      %s24 = sphi 0, %s22
      %s34 = sphi 0, %s36
      %s37 = sphi 0, %s34
      %s38 = sphi 0, %s37
      %s54 = sphi 0, %s38
      %s60 = sphi 0, %s62
      %s63 = sphi 0, %s60
      %s64 = sphi 0, %s63
      %s80 = sphi 0, %s64
      %s86 = sphi 0, %s88
      %s89 = sphi 0, %s86
      %s90 = sphi 0, %s89
      %s106 = sphi 0, %s90
      %s112 = sphi 0, %s114
      %s115 = sphi 0, %s112
      %s116 = sphi 0, %s115
      %s132 = sphi 0, %s116
    $region4: #{tpu_custom_call.1} parent=1 // loop_header_branch
      %15 = sbr.rel (%p13) target = $region8
    $region5: #{tpu_custom_call.1} parent=1 // loop_body
      %s17 = ssub.s32 %s12, 1
      %s18 = ssub.s32 %s12, 2
      %s25 = sadd.s32 1, %s20
      %p26 = scmp.ge.s32.totalorder %s25, 4
      %s27 = scalar_select %p26, 0, %s25
      %s28 = sadd.s32 1, %s19
      %s29 = scalar_select %p26, %s28, %s19
      %p30 = scmp.ge.s32.totalorder %s29, 2
      %s31 = scalar_select %p30, 0, %s29
      %s32 = ssub.s32 %s19, %s31
      %p33 = scmp.eq.s32.totalorder %s32, 0
      %s35 = sadd.s32 %s34, 1
      %s36 = scalar_select %p33, %s34, %s35
      %p39 = pneg %p33
      %p40 = scmp.eq.s32.totalorder %s12, 7
      %p41 = por %p39, %p40
      %p42 = scmp.ne.s32.totalorder %s34, %s37
      %p43 = scmp.eq.s32.totalorder %s12, 0
      %p44 = por %p42, %p43
      %p45 = scmp.ne.s32.totalorder %s34, %s37
      %p46 = scmp.eq.s32.totalorder %s17, 7
      %p47 = por %p45, %p46
      %p48 = scmp.ne.s32.totalorder %s37, %s38
      %p49 = scmp.eq.s32.totalorder %s17, 0
      %p50 = por %p48, %p49
      %p51 = scmp.ne.s32.totalorder %s37, %s38
      %p52 = scmp.eq.s32.totalorder %s18, 7
      %p53 = por %p51, %p52
      %p55 = scmp.ne.s32.totalorder %s38, %s54
      %p56 = scmp.eq.s32.totalorder %s18, 0
      %p57 = por %p55, %p56
      %s58 = ssub.s32 %s20, %s27
      %p59 = scmp.eq.s32.totalorder %s58, 0
      %s61 = sadd.s32 %s60, 1
      %s62 = scalar_select %p59, %s60, %s61
      %p65 = pneg %p59
      %p66 = scmp.eq.s32.totalorder %s12, 7
      %p67 = por %p65, %p66
      %p68 = scmp.ne.s32.totalorder %s60, %s63
      %p69 = scmp.eq.s32.totalorder %s12, 0
      %p70 = por %p68, %p69
      %p71 = scmp.ne.s32.totalorder %s60, %s63
      %p72 = scmp.eq.s32.totalorder %s17, 7
      %p73 = por %p71, %p72
      %p74 = scmp.ne.s32.totalorder %s63, %s64
      %p75 = scmp.eq.s32.totalorder %s17, 0
      %p76 = por %p74, %p75
      %p77 = scmp.ne.s32.totalorder %s63, %s64
      %p78 = scmp.eq.s32.totalorder %s18, 7
      %p79 = por %p77, %p78
      %p81 = scmp.ne.s32.totalorder %s64, %s80
      %p82 = scmp.eq.s32.totalorder %s18, 0
      %p83 = por %p81, %p82
      %s84 = ssub.s32 %s19, %s31
      %p85 = scmp.eq.s32.totalorder %s84, 0
      %s87 = sadd.s32 %s86, 1
      %s88 = scalar_select %p85, %s86, %s87
      %p91 = pneg %p85
      %p92 = scmp.eq.s32.totalorder %s12, 7
      %p93 = por %p91, %p92
      %p94 = scmp.ne.s32.totalorder %s86, %s89
      %p95 = scmp.eq.s32.totalorder %s12, 0
      %p96 = por %p94, %p95
      %p97 = scmp.ne.s32.totalorder %s86, %s89
      %p98 = scmp.eq.s32.totalorder %s17, 7
      %p99 = por %p97, %p98
      %p100 = scmp.ne.s32.totalorder %s89, %s90
      %p101 = scmp.eq.s32.totalorder %s17, 0
      %p102 = por %p100, %p101
      %p103 = scmp.ne.s32.totalorder %s89, %s90
      %p104 = scmp.eq.s32.totalorder %s18, 7
      %p105 = por %p103, %p104
      %p107 = scmp.ne.s32.totalorder %s90, %s106
      %p108 = scmp.eq.s32.totalorder %s18, 0
      %p109 = por %p107, %p108
      %s110 = ssub.s32 %s19, %s31
      %p111 = scmp.eq.s32.totalorder %s110, 0
      %s113 = sadd.s32 %s112, 1
      %s114 = scalar_select %p111, %s112, %s113
      %p117 = pneg %p111
      %p118 = scmp.eq.s32.totalorder %s12, 7
      %p119 = por %p117, %p118
      %p120 = scmp.ne.s32.totalorder %s112, %s115
      %p121 = scmp.eq.s32.totalorder %s12, 0
      %p122 = por %p120, %p121
      %p123 = scmp.ne.s32.totalorder %s112, %s115
      %p124 = scmp.eq.s32.totalorder %s17, 7
      %p125 = por %p123, %p124
      %p126 = scmp.ne.s32.totalorder %s115, %s116
      %p127 = scmp.eq.s32.totalorder %s17, 0
      %p128 = por %p126, %p127
      %p129 = scmp.ne.s32.totalorder %s115, %s116
      %p130 = scmp.eq.s32.totalorder %s18, 7
      %p131 = por %p129, %p130
      %p133 = scmp.ne.s32.totalorder %s116, %s132
      %p134 = scmp.eq.s32.totalorder %s18, 0
      %p135 = por %p133, %p134
      %p136 = scmp.le.s32.totalorder 1, %s12
      %p137 = scmp.lt.s32.totalorder %s12, 9
      %p138 = pnand %p136, %p137
      %p139 = pneg %p138
      // Predicated region
      $region9: #{tpu_custom_call.1} parent=5 // pred_check
        _
      $region10: #{tpu_custom_call.1} parent=5 // pred_check_branch
        %141 = sbr.rel (%p138) target = $region12
      $region11: #{tpu_custom_call.1} parent=5 // pred_region
        %s142 = ssub.s32 %s12, 1
      $region12: #{tpu_custom_call.1} parent=5 // pred_fallthru
        _
      %p143 = scmp.lt.s32.totalorder %s12, 8
      // Predicated region
      $region13: #{tpu_custom_call.1} parent=5 // pred_check
        %p144 = pneg %p143
      $region14: #{tpu_custom_call.1} parent=5 // pred_check_branch
        %146 = sbr.rel (%p144) target = $region16
      $region15: #{tpu_custom_call.1} parent=5 // pred_region
        // Predicated region
        $region17: #{tpu_custom_call.1} parent=15 // pred_check
          %p147 = pneg %p44
        $region18: #{tpu_custom_call.1} parent=15 // pred_check_branch
          %149 = sbr.rel (%p147) target = $region20
        $region19: #{tpu_custom_call.1} parent=15 // pred_region
          %p150 = scmp.lt.s32.totalorder %s19, 1
          %s151 = scalar_select %p150, %s19, 1
          %s152 = smul.addr %s151, 8
          %s153 = scalar_lea.vmem %s0, %s152
        $region20: #{tpu_custom_call.1} parent=15 // pred_fallthru
          _
        // Predicated region
        $region21: #{tpu_custom_call.1} parent=15 // pred_check
          %p154 = pneg %p70
        $region22: #{tpu_custom_call.1} parent=15 // pred_check_branch
          %156 = sbr.rel (%p154) target = $region24
        $region23: #{tpu_custom_call.1} parent=15 // pred_region
          %s157 = sand.u32 %s60, 1
          %s158 = scalar_lea.sflag [#allocation7], %s157
          %s159 = sand.u32 %s60, 1
          %s160 = smul.addr %s159, 64
          %s161 = scalar_lea.vmem [#allocation6], %s160
          %s163 = ssub.s32 1024, 1024
          %164 = vsyncadd %s158, %s163
          %s165 = smul.addr %s20, 64
          %s166 = scalar_lea.hbm %s1, %s165
          %s167 = sshll.u32 %s161, 4
          %s168 = int_to_ptr.vmem [resolvable:$true] %s167
          %173 = dma.hbm_to_vmem [thread:$0]  %s166, 1024, %s168, %s158, 256, 64, 4
        $region24: #{tpu_custom_call.1} parent=15 // pred_fallthru
          _
        // Predicated region
        $region25: #{tpu_custom_call.1} parent=15 // pred_check
          %p174 = pneg %p96
        $region26: #{tpu_custom_call.1} parent=15 // pred_check_branch
          %176 = sbr.rel (%p174) target = $region28
        $region27: #{tpu_custom_call.1} parent=15 // pred_region
          %p177 = scmp.lt.s32.totalorder %s19, 1
          %s178 = scalar_select %p177, %s19, 1
          %s179 = smul.addr %s178, 8
          %s180 = scalar_lea.vmem %s2, %s179
        $region28: #{tpu_custom_call.1} parent=15 // pred_fallthru
          _
      $region16: #{tpu_custom_call.1} parent=5 // pred_fallthru
        _
      %p181 = scmp.le.s32.totalorder 1, %s12
      %p182 = scmp.lt.s32.totalorder %s12, 9
      %p183 = pnand %p181, %p182
      %p184 = pneg %p183
      // Predicated region
      $region29: #{tpu_custom_call.1} parent=5 // pred_check
        _
      $region30: #{tpu_custom_call.1} parent=5 // pred_check_branch
        %186 = sbr.rel (%p183) target = $region32
      $region31: #{tpu_custom_call.1} parent=5 // pred_region
        %s187 = ssub.s32 %s12, 1
        %s188 = sand.u32 %s63, 1
        %s189 = scalar_lea.sflag [#allocation7], %s188
        %s190 = sand.u32 %s63, 1
        %s191 = smul.addr %s190, 64
        %s192 = scalar_lea.vmem [#allocation6], %s191
        // Predicated region
        $region33: #{tpu_custom_call.1} parent=31 // pred_check
          %p193 = pneg %p76
        $region34: #{tpu_custom_call.1} parent=31 // pred_check_branch
          %195 = sbr.rel (%p193) target = $region36
        $region35: #{tpu_custom_call.1} parent=31 // pred_region
          %196 = dma.done %s189, 1024
        $region36: #{tpu_custom_call.1} parent=31 // pred_fallthru
          _
        %p197 = scmp.lt.s32.totalorder %s21, 1
        %s198 = scalar_select %p197, %s21, 1
        %s199 = smul.addr %s198, 8
        %s200 = scalar_lea.vmem %s0, %s199
        %p201 = pneg %p50
        %p202 = pneg %p47
        %s203 = sand.u32 %s63, 1
        %s204 = scalar_lea.sflag [#allocation7], %s203
        %s205 = sand.u32 %s63, 1
        %s206 = smul.addr %s205, 64
        %s207 = scalar_lea.vmem [#allocation6], %s206
        %p208 = pneg %p76
        %p209 = pneg %p73
        %p210 = scmp.lt.s32.totalorder %s21, 1
        %s211 = scalar_select %p210, %s21, 1
        %s212 = smul.addr %s211, 8
        %s213 = scalar_lea.vmem %s2, %s212
        %p214 = pneg %p102
        %p215 = pneg %p99
        %p216 = pneg %p128
        %p217 = pneg %p125
        %p218 = scmp.lt.s32.totalorder %s21, 1
        %s219 = scalar_select %p218, %s21, 1
        %s220 = smul.addr %s219, 8
        %s221 = scalar_lea.vmem %s3, %s220
        %p222 = scmp.lt.s32.totalorder %s21, 1
        %s223 = scalar_select %p222, %s21, 1
        %s224 = smul.addr %s223, 8
        %s225 = scalar_lea.vmem %s0, %s224
        %p226 = scmp.lt.s32.totalorder %s21, 1
        %s227 = scalar_select %p226, %s21, 1
        %s228 = smul.addr %s227, 8
        %s229 = scalar_lea.vmem %s2, %s228
        %p230 = scmp.lt.s32.totalorder %s21, 1
        %s231 = scalar_select %p230, %s21, 1
        %s232 = smul.addr %s231, 8
        %s233 = scalar_lea.vmem %s3, %s232
        %p235 = scmp.eq.s32.totalorder %s22, 0
        // Predicated region
        $region37: #{tpu_custom_call.1} parent=31 // pred_check
          %p236 = pneg %p235
        $region38: #{tpu_custom_call.1} parent=31 // pred_check_branch
          %238 = sbr.rel (%p236) target = $region40
        $region39: #{tpu_custom_call.1} parent=31 // pred_region
          %v239 = vld [vmem:[%s225] sm:$0xff]
          %v240 = vmul.f32 %v239, %v239
          %241 = vadd.xlane.f32.xlu0 %v240
          %v242 = vpop.xlane.xlu0 %241
          %v243 = vmax.f32 %v242, 1e-24
          %v244 = vrsqrt.pop %v243
          %v245 = vmul.f32 %v239, %v244
          %v246 = vpack.c.bf16 %v245, %v245
          %247 = vst [vmem:[#allocation2] sm:$0xf] %v246
          %vm248 = vcmask 7168
          %249 = vst.msk [vmem:[#allocation3] sm:$0xff] %vm248, -inf
          %250 = vst.msk [vmem:[#allocation4] sm:$0xff] %vm248, 0.0
          %251 = vst.msk [vmem:[#allocation5] sm:$0xff] %vm248, 0.0
        $region40: #{tpu_custom_call.1} parent=31 // pred_fallthru
          _
        %v252 = vld [vmem:[#allocation2] sm:$0xf]
        %v253 = vld [vmem:[%s192] sm:$0xf]
        %v254 = vld [vmem:[%s192 + $0x4] sm:$0xf]
        %v255 = vld [vmem:[%s192 + $0x8] sm:$0xf]
        %v256 = vld [vmem:[%s192 + $0xc] sm:$0xf]
        %v257 = vld [vmem:[%s192 + $0x10] sm:$0xf]
        %v258 = vld [vmem:[%s192 + $0x14] sm:$0xf]
        %v259 = vld [vmem:[%s192 + $0x18] sm:$0xf]
        %v260 = vld [vmem:[%s192 + $0x1c] sm:$0xf]
        %v261 = vld [vmem:[%s192 + $0x20] sm:$0xf]
        %v262 = vld [vmem:[%s192 + $0x24] sm:$0xf]
        %v263 = vld [vmem:[%s192 + $0x28] sm:$0xf]
        %v264 = vld [vmem:[%s192 + $0x2c] sm:$0xf]
        %v265 = vld [vmem:[%s192 + $0x30] sm:$0xf]
        %v266 = vld [vmem:[%s192 + $0x34] sm:$0xf]
        %v267 = vld [vmem:[%s192 + $0x38] sm:$0xf]
        %v268 = vld [vmem:[%s192 + $0x3c] sm:$0xf]
        %v285 = vunpack.c.l.b16 %v253
        %v286 = vunpack.c.l.b16 %v254
        %v287 = vunpack.c.l.b16 %v255
        %v288 = vunpack.c.l.b16 %v256
        %v289 = vunpack.c.l.b16 %v257
        %v290 = vunpack.c.l.b16 %v258
        %v291 = vunpack.c.l.b16 %v259
        %v292 = vunpack.c.l.b16 %v260
        %v293 = vunpack.c.l.b16 %v261
        %v294 = vunpack.c.l.b16 %v262
        %v295 = vunpack.c.l.b16 %v263
        %v296 = vunpack.c.l.b16 %v264
        %v297 = vunpack.c.l.b16 %v265
        %v298 = vunpack.c.l.b16 %v266
        %v299 = vunpack.c.l.b16 %v267
        %v300 = vunpack.c.l.b16 %v268
        %v301 = vpack.c.b16 %v286, %v285
        %v302 = vpack.c.b16 %v288, %v287
        %v303 = vpack.c.b16 %v290, %v289
        %v304 = vpack.c.b16 %v292, %v291
        %v305 = vpack.c.b16 %v294, %v293
        %v306 = vpack.c.b16 %v296, %v295
        %v307 = vpack.c.b16 %v298, %v297
        %v308 = vpack.c.b16 %v300, %v299
        %317 = vmatprep.subr.bf16.mxu0 0
        %318 = vmatpush1.bf16.msra.mxu0 %v308
        %319 = vmatprep.subr.bf16.mxu0 0
        %320 = vmatpush1.bf16.msra.mxu0 %v307
        %321 = vmatprep.subr.bf16.mxu0 0
        %322 = vmatpush1.bf16.msra.mxu0 %v306
        %323 = vmatprep.subr.bf16.mxu0 0
        %324 = vmatpush1.bf16.msra.mxu0 %v305
        %325 = vmatprep.subr.bf16.mxu0 0
        %326 = vmatpush1.bf16.msra.mxu0 %v304
        %327 = vmatprep.subr.bf16.mxu0 0
        %328 = vmatpush1.bf16.msra.mxu0 %v303
        %329 = vmatprep.subr.bf16.mxu0 0
        %330 = vmatpush1.bf16.msra.mxu0 %v302
        %331 = vmatprep.subr.bf16.mxu0 0
        %332 = vmatpush1.bf16.msra.mxu0 %v301
        %333 = vmatprep.subr.bf16.mxu0 0
        %334 = vmatpush2.bf16.msra.mxu0 0
        %335 = vmatprep.subr.bf16.mxu0 0
        %336 = vmatpush2.bf16.msra.mxu0 0
        %337 = vmatprep.subr.bf16.mxu0 0
        %338 = vmatpush2.bf16.msra.mxu0 0
        %339 = vmatprep.subr.bf16.mxu0 0
        %340 = vmatpush2.bf16.msra.mxu0 0
        %341 = vmatprep.subr.bf16.mxu0 0
        %342 = vmatpush2.bf16.msra.mxu0 0
        %343 = vmatprep.subr.bf16.mxu0 0
        %344 = vmatpush2.bf16.msra.mxu0 0
        %345 = vmatprep.subr.bf16.mxu0 0
        %346 = vmatpush2.bf16.msra.mxu0 0
        %347 = vmatprep.subr.bf16.mxu0 0
        %348 = vmatpush2.bf16.msra.mxu0 0
        %349 = vmatprep.mubr.bf16.mxu0 0
        %350 = vmatmul.mubr.bf16.gmra.mxu0 %v252
        %v351 = vpop.f32.mrf.mxu0
        %v352 = vadd.f32 0.0, %v351
        %v353 = vpop.f32.mrf.mxu0
        %v354 = vpop.f32.mrf.mxu0
        %v355 = vpop.f32.mrf.mxu0
        %356 = vdwg.mxu0
        %v357 = vld [vmem:[%s229] sm:$0xff]
        %s358 = smul.u32 %s22, 128
        %v359 = vstv %s358
        %v360 = vsub.s32 %v357, %v359
        %v361 = vlaneseq
        %v362 = vand.u32 %v361, 127
        %363 = vset.pattern.permute.xlu0 0
        %364 = vperm.xlu0 %363, %v360
        %v365 = vpop.permute.xlu0 %364
        %vm366 = vcmp.eq.s32.totalorder %v362, %v365
        %v367 = vsel %vm366, %v352, 0.0
        %368 = vadd.xlane.f32.xlu0 %v367
        %v369 = vpop.xlane.xlu0 %368
        %v370 = vmul.f32 %v369, 0.033333335
        %v371 = vld [vmem:[#allocation5] sm:$0xff]
        %v372 = vadd.f32 %v371, %v370
        %vm373 = vcmask 7168
        %374 = vst.msk [vmem:[#allocation5] sm:$0xff] %vm373, %v372
        %v375 = vmul.f32 %v370, %v370
        %v376 = vsub.f32 1.0, %v375
        %v377 = vmax.f32 %v376, 0.0
        %v378 = vmin.f32 %v377, 1.0
        %v379 = vrsqrt.pop %v378
        %v380 = vmul.f32 %v378, %v379
        %vm381 = vcmp.eq.f32.partialorder %v378, inf
        %v382 = vsel %vm381, %v378, %v380
        %vm383 = vcmp.eq.f32.partialorder %v378, 0.0
        %v384 = vand.u32 %v378, 2147483648
        %v385 = vsel %vm383, %v384, %v382
        %v386 = vmul.f32 %v370, 0.87758255
        %v387 = vmul.f32 %v385, 0.47942555
        %v388 = vsub.f32 %v386, %v387
        %vm389 = vcmp.gt.f32.partialorder %v370, -0.87758255
        %v390 = vsub.f32 %v370, 0.23971277
        %v391 = vsel %vm389, %v388, %v390
        %v392 = vmul.f32 %v391, 30.0
        %v393 = vsel %vm366, %v392, %v352
        %s394 = ssub.s32 500, %s358
        %v395 = vstv %s394
        %vm396 = vcmp.lt.s32.totalorder %v362, %v395
        %v397 = vsel %vm396, %v393, -inf
        %v398 = vld [vmem:[#allocation3] sm:$0xff]
        %399 = vmax.xlane.f32.xlu0 %v397
        %v400 = vpop.xlane.xlu0 %399
        %v401 = vmax.f32 %v398, %v400
        %v402 = vsub.f32 %v398, %v401
        %v403 = vmul.f32 %v402, 1.442695
        %v404 = vpow.pop %v403
        %v405 = vld [vmem:[#allocation4] sm:$0xff]
        %v406 = vmul.f32 %v405, %v404
        %408 = vset.pattern.permute.xlu0 0
        %409 = vperm.xlu0 %408, %v401
        %v410 = vpop.permute.xlu0 %409
        %v412 = vsub.f32 %v397, %v410
        %v413 = vmul.f32 %v412, 1.442695
        %v414 = vpow.pop %v413
        %415 = vadd.xlane.f32.xlu0 %v414
        %v416 = vpop.xlane.xlu0 %415
        %v417 = vadd.f32 %v406, %v416
        %418 = vst.msk [vmem:[#allocation4] sm:$0xff] %vm373, %v417
        %419 = vst.msk [vmem:[#allocation3] sm:$0xff] %vm373, %v401
        %p420 = scmp.eq.s32.totalorder %s22, 3
        // Predicated region
        $region41: #{tpu_custom_call.1} parent=31 // pred_check
          %p421 = pneg %p420
        $region42: #{tpu_custom_call.1} parent=31 // pred_check_branch
          %423 = sbr.rel (%p421) target = $region44
        $region43: #{tpu_custom_call.1} parent=31 // pred_region
          %v424 = vld [vmem:[#allocation5] sm:$0xff]
          %v425 = vmul.f32 %v424, %v424
          %v426 = vsub.f32 1.0, %v425
          %v427 = vmax.f32 %v426, 0.0
          %v428 = vmin.f32 %v427, 1.0
          %v429 = vrsqrt.pop %v428
          %v430 = vmul.f32 %v428, %v429
          %vm431 = vcmp.eq.f32.partialorder %v428, inf
          %v432 = vsel %vm431, %v428, %v430
          %vm433 = vcmp.eq.f32.partialorder %v428, 0.0
          %v434 = vand.u32 %v428, 2147483648
          %v435 = vsel %vm433, %v434, %v432
          %v436 = vmul.f32 %v424, 0.87758255
          %v437 = vmul.f32 %v435, 0.47942555
          %v438 = vsub.f32 %v436, %v437
          %vm439 = vcmp.gt.f32.partialorder %v424, -0.87758255
          %v440 = vsub.f32 %v424, 0.23971277
          %v441 = vsel %vm439, %v438, %v440
          %v442 = vld [vmem:[#allocation3] sm:$0xff]
          %v443 = vld [vmem:[#allocation4] sm:$0xff]
          %v444 = vlog2.pop %v443
          %v445 = vmul.f32 %v444, 0.6931472
          %v446 = vadd.f32 %v442, %v445
          %v447 = vmul.f32 %v441, 30.0
          %v448 = vsub.f32 %v446, %v447
          %449 = vst.msk [vmem:[%s233] sm:$0xff] %vm373, %v448
        $region44: #{tpu_custom_call.1} parent=31 // pred_fallthru
          _
        %p450 = scmp.lt.s32.totalorder %s21, 1
        %s451 = scalar_select %p450, %s21, 1
        %s452 = smul.addr %s451, 8
        %s453 = scalar_lea.vmem %s3, %s452
        // Predicated region
        $region45: #{tpu_custom_call.1} parent=31 // pred_check
          %p454 = pneg %p125
        $region46: #{tpu_custom_call.1} parent=31 // pred_check_branch
          %456 = sbr.rel (%p454) target = $region48
        $region47: #{tpu_custom_call.1} parent=31 // pred_region
          _
        $region48: #{tpu_custom_call.1} parent=31 // pred_fallthru
          _
      $region32: #{tpu_custom_call.1} parent=5 // pred_fallthru
        _
      %p457 = scmp.le.s32.totalorder 2, %s12
      // Predicated region
      $region49: #{tpu_custom_call.1} parent=5 // pred_check
        %p458 = pneg %p457
      $region50: #{tpu_custom_call.1} parent=5 // pred_check_branch
        %460 = sbr.rel (%p458) target = $region52
      $region51: #{tpu_custom_call.1} parent=5 // pred_region
        %s461 = ssub.s32 %s12, 2
        // Predicated region
        $region53: #{tpu_custom_call.1} parent=51 // pred_check
          %p462 = pneg %p131
        $region54: #{tpu_custom_call.1} parent=51 // pred_check_branch
          %464 = sbr.rel (%p462) target = $region56
        $region55: #{tpu_custom_call.1} parent=51 // pred_region
          %p465 = scmp.lt.s32.totalorder %s23, 1
          %s466 = scalar_select %p465, %s23, 1
          %s467 = smul.addr %s466, 8
          %s468 = scalar_lea.vmem %s3, %s467
        $region56: #{tpu_custom_call.1} parent=51 // pred_fallthru
          _
      $region52: #{tpu_custom_call.1} parent=5 // pred_fallthru
        _
    $region6: #{tpu_custom_call.1} parent=1 // loop_footer
      %s16 = sadd.s32 1, %s12
    $region7: #{tpu_custom_call.1} parent=1 // loop_footer_branch
      %11 = sbr.rel target = $region3
    $region8: #{tpu_custom_call.1} parent=1 // loop_exit
      _
    %469 = vsyncpa [#allocation7], 1
    %s470 = scalar_lea.sflag [#allocation7], 1
    %471 = vsyncpa %s470, 1

</llo_original>
